<compile_context>
chip_gen: v5e
topology: v5e:2x2
jax: 0.10.0
libtpu: 0.0.40
codegen_flags: <defaults>
</compile_context>

<pallas_src>
import jax
import jax.numpy as jnp
from jax.experimental import pallas as pl
from jax.experimental.pallas import tpu as pltpu

_SUB = 8                                   # sublane granularity for block rows
_LANE_CANDIDATES = (2048, 1024, 512, 256, 128)
_VMEM_LIMIT_BYTES = 48 * 1024 * 1024       # safe on v5e/v6e (128 MiB) and v7x (64 MiB)


def _identity_kernel(x_ref, o_ref):
    # Whole-tile pass-through; lane axis is a multiple of 128 so stores are
    # full-width unmasked `vst`.
    o_ref[...] = x_ref[...]


def _tile_bytes_for_chip():
    """Per-buffer tile budget, tuned per TPU generation (best effort)."""
    try:
        kind = jax.devices()[0].device_kind.lower()
    except Exception:  # pragma: no cover - defensive
        return 4 << 20
    if "v7" in kind:
        return 8 << 20          # 3.2 TB/s HBM: amortize ~0.35 us/step overhead
    if "v5 lite" in kind or "v5e" in kind or "v5lite" in kind:
        return 3 << 20          # smaller default scoped VMEM on v5e
    return 4 << 20              # v6e and everything else


def _choose_layout(total, itemsize):
    """Pick a lane-dense (rows, lane) view with rows % 8 == 0.

    Returns (rows, lane, tile_rows, padded_total).  padded_total > total means
    the flattened array must be zero-padded before the reshape.
    """
    # Prefer a lane width that makes the element count a multiple of 8*lane
    # (no padding needed, rows already a multiple of the sublane count).
    lane = next((c for c in _LANE_CANDIDATES if total % (_SUB * c) == 0), None)
    if lane is not None:
        padded = total
    else:
        # Fallback: pad up to a multiple of 8*lane so we still get a
        # lane-dense, tileable layout (pad is at most 8*lane-1 elements).
        lane = next((c for c in _LANE_CANDIDATES if total % c == 0), 512)
        chunk = _SUB * lane
        padded = ((total + chunk - 1) // chunk) * chunk
    rows = padded // lane                  # always a multiple of _SUB

    # Per-buffer tile budget (rows per grid step).
    tile_bytes = _tile_bytes_for_chip()
    max_tile = max(_SUB, (tile_bytes // (lane * itemsize)) // _SUB * _SUB)
    max_tile = min(max_tile, rows)
    # Keep the grid at >= 2 steps whenever rows permit, so input prefetch and
    # output writeback overlap in the pipeline.
    if rows >= 2 * _SUB:
        max_tile = min(max_tile, max(_SUB, (rows // 2) // _SUB * _SUB))
    tile = max_tile
    while tile > _SUB and rows % tile != 0:
        tile -= _SUB
    if rows % tile != 0:                   # cannot happen (rows % 8 == 0), but be safe
        tile = rows
    return rows, lane, tile, padded


def _pallas_identity_copy(x2d, tile_rows):
    rows, lane = x2d.shape
    grid = rows // tile_rows
    return pl.pallas_call(
        _identity_kernel,
        out_shape=jax.ShapeDtypeStruct((rows, lane), x2d.dtype),
        grid_spec=pltpu.PrefetchScalarGridSpec(
            num_scalar_prefetch=0,
            grid=(grid,),
            in_specs=[pl.BlockSpec((tile_rows, lane), lambda i: (i, 0))],
            out_specs=pl.BlockSpec((tile_rows, lane), lambda i: (i, 0)),
        ),
        compiler_params=pltpu.CompilerParams(
            dimension_semantics=("parallel",),
            vmem_limit_bytes=_VMEM_LIMIT_BYTES,
        ),
    )(x2d)


def your_model_forward(x, *, force_pallas_copy=False):
    """Forward pass matching the (elided) YourModel.forward semantics.

    By default the identity is returned directly (no kernel, no HBM traffic),
    which is the fastest possible implementation.  Set force_pallas_copy=True
    to route through the tiled Pallas copy kernel instead.
    """
    if not force_pallas_copy:
        return x

    shape = x.shape
    total = 1
    for d in shape:
        total *= d
    itemsize = jnp.dtype(x.dtype).itemsize

    rows, lane, tile_rows, padded = _choose_layout(total, itemsize)

    x_flat = x.reshape(-1)
    if padded != total:
        x_flat = jnp.pad(x_flat, (0, padded - total))
    x2d = x_flat.reshape(rows, lane)

    out2d = _pallas_identity_copy(x2d, tile_rows)

    out_flat = out2d.reshape(-1)
    if padded != total:
        out_flat = out_flat[:total]
    return out_flat.reshape(shape)


if __name__ == "__main__":
    key = jax.random.PRNGKey(0)
    # Small NCHW input consistent with an image-style model.
    x = jax.random.normal(key, (2, 4, 16, 16), dtype=jnp.float32)
    x_host = jax.device_get(x)  # reference snapshot

    # Fast path (the recommended implementation): no kernel at all.
    y_fast = your_model_forward(x)
    jax.block_until_ready(y_fast)
    assert y_fast.shape == x.shape and y_fast.dtype == x.dtype
    assert bool(jnp.allclose(y_fast, x_host))

    # Pallas copy path: run the kernel once and verify.
    y = your_model_forward(x, force_pallas_copy=True)
    jax.block_until_ready(y)
    assert y.shape == x.shape and y.dtype == x.dtype
    assert bool(jnp.allclose(y, x_host))

    print("KERNEL_OK")
</pallas_src>

<mosaic_0001>
module attributes {stable_mosaic.version = 11 : i64} {
  func.func @_identity_kernel(%arg0: i32, %arg1: memref<8x256xf32, #tpu.memory_space<vmem>>, %arg2: memref<8x256xf32, #tpu.memory_space<vmem>>) attributes {dimension_semantics = [#tpu.dimension_semantics<parallel>], iteration_bounds = array<i64: 1>, scalar_prefetch = 0 : i64, scratch_operands = 0 : i64, tpu.core_type = #tpu.core_type<tc>, window_params = [{transform_indices = @transform_0, window_bounds = array<i64: 8, 256>}, {transform_indices = @transform_1, window_bounds = array<i64: 8, 256>}]} {
    %c0 = arith.constant 0 : index
    %c0_0 = arith.constant 0 : index
    %0 = vector.load %arg1[%c0, %c0_0] : memref<8x256xf32, #tpu.memory_space<vmem>>, vector<8x256xf32>
    %c0_1 = arith.constant 0 : index
    %c0_2 = arith.constant 0 : index
    %1 = vector.load %arg2[%c0_1, %c0_2] : memref<8x256xf32, #tpu.memory_space<vmem>>, vector<8x256xf32>
    tpu.vector_store %arg2[%c0_1, %c0_2], %0 {strides = array<i32>} : memref<8x256xf32, #tpu.memory_space<vmem>>, vector<8x256xf32>,
    return
  }
  func.func @transform_0(%arg0: i32) -> (i32, i32) {
    %c0_i32 = arith.constant 0 : i32
    %c0_i32_0 = arith.constant 0 : i32
    return %arg0, %c0_i32 : i32, i32
  }
  func.func @transform_1(%arg0: i32) -> (i32, i32) {
    %c0_i32 = arith.constant 0 : i32
    %c0_i32_0 = arith.constant 0 : i32
    return %arg0, %c0_i32 : i32, i32
  }
}

</mosaic_0001>

<llo_original>
// kernel: tpu_custom_call.1
$region0: #{tpu_custom_call.1}
  #allocation0 [shape = 'u32[]', space=smem, size = 0x4, offset = 0x4, fixed_abs, tag = 'smem constant byte address 0x4 - core index']
  #allocation1 [shape = 'u32[72,128]{1,0:T(1,128)}', space=vmem, size = 0x9000, scoped, tag = 'internal scratch']
  %s0 = inlined_call_operand.hbm [shape: f32[8,256], index: 0, kind: input, shape index: {}]
  %s1 = inlined_call_operand.hbm [shape: f32[8,256], index: 1, kind: output, shape index: {}]
  %s2 = sld [smem:[#allocation0]]
  $region18: #{tpu_custom_call.1} parent=0
    _
  %s4 = ssub.s32 1, %s2
  %s5 = scalar_select 0, %s4, %s2
  $region1: #{tpu_custom_call.1} parent=0
    #allocation2 [shape = 'u8[8192]{0}', space=vmem, size = 0x2000, scoped, tag = 'input window, operand 0, single buffered']
    #allocation3 [shape = 's32[1]{0}', space=sflag, size = 0x4, scoped, tag = 'scoped memory for tpu_custom_call.1']
    #allocation4 [shape = 's32[1]{0}', space=sflag, size = 0x4, scoped, tag = 'scoped memory for tpu_custom_call.1']
    #allocation5 [shape = 'u8[8192]{0}', space=vmem, size = 0x2000, scoped, tag = 'output window, operand 0, single buffered']
    %6 = vsyncpa [#allocation3], 0
    %7 = vsyncpa [#allocation4], 0
    // Predicated region
    $region2: #{tpu_custom_call.1} parent=1 // pred_check
      _
    $region3: #{tpu_custom_call.1} parent=1 // pred_check_branch
      %9 = sbr.rel (0) target = $region5
    $region4: #{tpu_custom_call.1} parent=1 // pred_region
      %11 = vsyncadd [#allocation3], 0
      %s13 = sshll.u32 %s0, 4
      %s14 = int_to_ptr.hbm [resolvable:$true] %s13
      %s15 = sshll.u32 [#allocation2], 4
      %s16 = int_to_ptr.vmem [resolvable:$true] %s15
      %18 = dma.hbm_to_vmem [thread:$0]  %s14, 256, %s16, [#allocation3]
    $region5: #{tpu_custom_call.1} parent=1 // pred_fallthru
      _
    // Predicated region
    $region6: #{tpu_custom_call.1} parent=1 // pred_check
      _
    $region7: #{tpu_custom_call.1} parent=1 // pred_check_branch
      %20 = sbr.rel (0) target = $region9
    $region8: #{tpu_custom_call.1} parent=1 // pred_region
      %22 = dma.done [#allocation3], 256
    $region9: #{tpu_custom_call.1} parent=1 // pred_fallthru
      _
    %v23 = vld [vmem:[#allocation2] sm:$0xff]
    %v24 = vld [vmem:[#allocation2 + $0x8] sm:$0xff]
    %25 = vst [vmem:[#allocation5] sm:$0xff] %v23
    %26 = vst [vmem:[#allocation5 + $0x8] sm:$0xff] %v24
    // Predicated region
    $region10: #{tpu_custom_call.1} parent=1 // pred_check
      _
    $region11: #{tpu_custom_call.1} parent=1 // pred_check_branch
      %28 = sbr.rel (0) target = $region13
    $region12: #{tpu_custom_call.1} parent=1 // pred_region
      %30 = vsyncadd [#allocation4], 0
      %s32 = sshll.u32 [#allocation5], 4
      %s33 = int_to_ptr.vmem [resolvable:$true] %s32
      %s34 = sshll.u32 %s1, 4
      %s35 = int_to_ptr.hbm [resolvable:$true] %s34
      %37 = dma.vmem_to_hbm [thread:$0]  %s33, 256, %s35, [#allocation4]
    $region13: #{tpu_custom_call.1} parent=1 // pred_fallthru
      _
    // Predicated region
    $region14: #{tpu_custom_call.1} parent=1 // pred_check
      _
    $region15: #{tpu_custom_call.1} parent=1 // pred_check_branch
      %39 = sbr.rel (0) target = $region17
    $region16: #{tpu_custom_call.1} parent=1 // pred_region
      %41 = dma.done [#allocation4], 256
    $region17: #{tpu_custom_call.1} parent=1 // pred_fallthru
      _
    %42 = vsyncpa [#allocation3], 1
    %43 = vsyncpa [#allocation4], 1

</llo_original>
